<compile_context>
chip_gen: v7x
topology: tpu7x:2x2x1
jax: 0.10.0
libtpu: 0.0.40
codegen_flags: <defaults>
</compile_context>

<pallas_src>
import functools

import jax
import jax.numpy as jnp
from jax.experimental import pallas as pl
from jax.experimental.pallas import tpu as pltpu


def _round_up(n, m):
    return ((n + m - 1) // m) * m


# Whole-array, grid-invariant operand: placed once in VMEM (single buffer).
_MEMSPACE = getattr(pltpu, "MemorySpace", None) or getattr(pltpu, "TPUMemorySpace")
_VMEM_RESIDENT_SPEC = pl.BlockSpec(memory_space=_MEMSPACE.VMEM)


def _mlp_kernel(x_ref, *refs, n_layers, compute_dtype):
    """Fused forward: h = x; repeat (h @ W_i + b_i, ReLU except last); write out.

    refs = (w_0, b_0, ..., w_{L-1}, b_{L-1}, o_ref).  All layer chaining happens
    on VMEM-resident values inside one kernel body, so intermediate activations
    never round-trip through HBM.
    """
    o_ref = refs[2 * n_layers]
    # x arrives in its HBM dtype (typically f32); cast to the MXU operand dtype
    # here so the wrapper never materializes a padded/casted copy of x.
    h = x_ref[...].astype(compute_dtype)
    for li in range(n_layers):
        w_ref = refs[2 * li]
        b_ref = refs[2 * li + 1]
        acc = jnp.dot(h, w_ref[...], preferred_element_type=jnp.float32)
        acc = acc + b_ref[...]                       # f32 epilogue; (1, N) broadcasts
        if li < n_layers - 1:
            acc = jnp.maximum(acc, 0.0)              # ReLU in f32
            h = acc.astype(compute_dtype)            # next MXU operand
        else:
            o_ref[...] = acc.astype(o_ref.dtype)


def init_params(key, input_dim, architecture, output_dim, dtype=jnp.float32):
    """Init mirroring torch.nn.Linear default (U[-1/sqrt(fan_in), +1/sqrt(fan_in)])."""
    sizes = [input_dim] + list(architecture) + [output_dim]
    params = []
    for i in range(len(sizes) - 1):
        fan_in, fan_out = sizes[i], sizes[i + 1]
        key, kw, kb = jax.random.split(key, 3)
        bound = 1.0 / jnp.sqrt(jnp.asarray(fan_in, dtype))
        w = jax.random.uniform(kw, (fan_in, fan_out), dtype, -bound, bound)
        b = jax.random.uniform(kb, (1, fan_out), dtype, -bound, bound)
        params.append((w, b))
    return params


def prepare_params(params, compute_dtype):
    """Pad weights/biases so every *output* feature dim is a multiple of 128.

    Layer 0 keeps its contraction (K) dim unpadded so x can be fed straight from
    HBM with a full-extent-K block (no wrapper pad/cast pass).  Deeper layers pad
    K to match the previous layer's padded, lane-dense output width.  Padding is
    exact zeros, so the forward result is unchanged.  Weights are cast to the MXU
    operand dtype; biases stay f32 (f32 epilogue).
    """
    padded = []
    for li, (w, b) in enumerate(params):
        k, n = w.shape
        kp = k if li == 0 else _round_up(k, 128)
        np_ = _round_up(n, 128)
        w_p = jnp.zeros((kp, np_), compute_dtype).at[:k, :n].set(
            w.astype(compute_dtype))
        b_p = jnp.zeros((1, np_), jnp.float32).at[:, :n].set(
            b.astype(jnp.float32))
        padded.append((w_p, b_p))
    return padded


def configurable_model_forward(x, params, dropout_rate=0.0,
                               compute_dtype=jnp.bfloat16, out_dtype=None,
                               batch_tile=512):
    """Forward pass of ConfigurableModel as ONE fused Pallas kernel call.

    Production path: bf16 operands + f32 MXU accumulation (compute_dtype=float32
    is validation-only; v5e's MXU decomposes f32 operands into multiple slow
    passes).
    """
    # nn.Dropout is the identity in eval mode / rate 0.0, which is what we implement.
    # TODO(synk): training-mode dropout (pltpu.prng_seed / prng_random_bits) not implemented.
    assert dropout_rate == 0.0, "only inference (dropout_rate == 0.0) is supported"

    n_layers = len(params)
    batch, in_f = x.shape
    out_dim = params[-1][0].shape[1]
    if out_dtype is None:
        out_dtype = compute_dtype          # bf16 writeback halves padded-output traffic

    padded = prepare_params(params, compute_dtype)
    out_pad = padded[-1][0].shape[1]

    # ---- batch (sublane) tiling ------------------------------------------------
    sub = 16 if jnp.dtype(compute_dtype) == jnp.dtype(jnp.bfloat16) else 8
    if batch <= sub:
        tm = sub
    else:
        # >= 2 batch tiles whenever possible so ("parallel",) actually spreads the
        # grid across both v7x TensorCores; cap at batch_tile rows per tile
        # (512-wide tiles sit near the HBM roofline vs ~63% at 256).
        tm = min(batch_tile, _round_up((batch + 1) // 2, sub))

    # ---- VMEM budget ------------------------------------------------------------
    try:
        vmem_cap = int(pltpu.get_tpu_info().vmem_capacity_bytes)
    except Exception:
        vmem_cap = 64 << 20                # conservative: v7x per-core VMEM
    w_bytes = sum(int(w.size) * w.dtype.itemsize + int(b.size) * b.dtype.itemsize
                  for w, b in padded)
    widest = max(w.shape[1] for w, _ in padded)

    def vmem_need(rows):
        x_tile = 2 * rows * in_f * x.dtype.itemsize                 # double-buffered in
        o_tile = 2 * rows * out_pad * jnp.dtype(out_dtype).itemsize  # double-buffered out
        act = rows * widest * 6                                      # f32 acc + bf16 h temps
        return w_bytes + x_tile + o_tile + act

    budget = int(0.6 * vmem_cap)
    while tm > sub and vmem_need(tm) > budget:
        tm = max(sub, _round_up(tm // 2, sub))
    # TODO(synk): if the resident weight set alone exceeds ~half of VMEM (very wide
    #             `architecture`), tile the widest layer's N/K over an extra grid axis
    #             instead of keeping every weight whole-array resident.

    batch_pad = _round_up(batch, tm)
    # Feed x straight from HBM whenever possible; only materialize a row-padded copy
    # when the batch does not divide into whole tiles (kept in x.dtype, no cast pass).
    if batch_pad != batch:
        x_in = jnp.zeros((batch_pad, in_f), x.dtype).at[:batch].set(x)
    else:
        x_in = x

    flat_inputs = [x_in]
    # x: (tm, in_f) full-extent-K block; cast to compute_dtype happens in-kernel.
    # (Optional knob per-chip: a 3-deep input pipeline via pipeline_mode=pl.Buffered(3)
    #  can smooth DMA jitter on v6e once VMEM headroom allows.)
    in_specs = [pl.BlockSpec((tm, in_f), lambda i: (i, 0))]
    for w_p, b_p in padded:
        flat_inputs += [w_p, b_p]
        # Grid-invariant whole-array operands: VMEM-resident, single-buffered.
        in_specs += [_VMEM_RESIDENT_SPEC, _VMEM_RESIDENT_SPEC]

    kernel = functools.partial(_mlp_kernel, n_layers=n_layers,
                               compute_dtype=compute_dtype)
    out = pl.pallas_call(
        kernel,
        out_shape=jax.ShapeDtypeStruct((batch_pad, out_pad), out_dtype),
        grid_spec=pltpu.PrefetchScalarGridSpec(
            num_scalar_prefetch=0,
            grid=(batch_pad // tm,),
            in_specs=in_specs,
            # Lane-dense (128-wide padded) output slab; sliced back outside.  A
            # (tm, out_dim) block would lower to masked vst.msk partial stores.
            out_specs=pl.BlockSpec((tm, out_pad), lambda i: (i, 0)),
        ),
        compiler_params=pltpu.CompilerParams(
            dimension_semantics=("parallel",),   # batch tiles shard across v7x TCs
            vmem_limit_bytes=int(min(vmem_cap,
                                     max(vmem_need(tm) + (8 << 20), 32 << 20))),
        ),
    )(*flat_inputs)
    return out[:batch, :out_dim]


def reference_forward(x, params, compute_dtype=jnp.float32):
    """Pure-JAX reference using the same operand-dtype / f32-accumulate recipe."""
    h = x.astype(compute_dtype)
    for li, (w, b) in enumerate(params):
        acc = jnp.dot(h, w.astype(compute_dtype),
                      preferred_element_type=jnp.float32) + b.astype(jnp.float32)
        if li != len(params) - 1:
            acc = jnp.maximum(acc, 0.0)
            h = acc.astype(compute_dtype)
        else:
            h = acc
    return h


if __name__ == "__main__":
    # Small shapes consistent with the module (an MLP on flat feature vectors).
    # input_dim deliberately NOT a multiple of 128 (the module default, 2882, isn't
    # either) so the full-extent-K / in-kernel-cast input path is exercised.
    batch = 8
    input_dim = 300
    architecture = [128, 64]   # hidden layer sizes
    output_dim = 12

    key = jax.random.PRNGKey(0)
    key, kx = jax.random.split(key)
    x = jax.random.normal(kx, (batch, input_dim), jnp.float32)
    params = init_params(key, input_dim, architecture, output_dim)

    # f32-operand path (validation only): tight check against the f32 reference.
    out_f32 = jax.block_until_ready(
        configurable_model_forward(x, params, compute_dtype=jnp.float32))
    ref_f32 = reference_forward(x, params, compute_dtype=jnp.float32)
    assert out_f32.shape == (batch, output_dim)
    assert jnp.allclose(out_f32, ref_f32, atol=5e-4, rtol=5e-4), "f32 mismatch"

    # bf16-operand / f32-accumulate path (production default); bf16 output.
    out_bf16 = jax.block_until_ready(
        configurable_model_forward(x, params, compute_dtype=jnp.bfloat16))
    ref_bf16 = reference_forward(x, params, compute_dtype=jnp.bfloat16)
    assert out_bf16.shape == (batch, output_dim)
    assert out_bf16.dtype == jnp.bfloat16
    assert jnp.allclose(out_bf16.astype(jnp.float32),
                        ref_bf16.astype(jnp.float32),
                        atol=3e-2, rtol=3e-2), "bf16 mismatch"
    # bf16 path still tracks the full-precision model closely.
    assert jnp.allclose(out_bf16.astype(jnp.float32), ref_f32,
                        atol=1e-1, rtol=1e-1), "bf16 drifted"

    print("KERNEL_OK")
</pallas_src>

<mosaic_0001>
module attributes {stable_mosaic.version = 11 : i64} {
  func.func @_mlp_kernel(%arg0: i32, %arg1: memref<8x300xf32, #tpu.memory_space<vmem>>, %arg2: memref<300x128xf32, #tpu.memory_space<vmem>>, %arg3: memref<1x128xf32, #tpu.memory_space<vmem>>, %arg4: memref<128x128xf32, #tpu.memory_space<vmem>>, %arg5: memref<1x128xf32, #tpu.memory_space<vmem>>, %arg6: memref<128x128xf32, #tpu.memory_space<vmem>>, %arg7: memref<1x128xf32, #tpu.memory_space<vmem>>, %arg8: memref<8x128xf32, #tpu.memory_space<vmem>>) attributes {dimension_semantics = [#tpu.dimension_semantics<parallel>], iteration_bounds = array<i64: 1>, scalar_prefetch = 0 : i64, scratch_operands = 0 : i64, tpu.core_type = #tpu.core_type<tc>, window_params = [{transform_indices = @transform_0, window_bounds = array<i64: 8, 300>}, {pipeline_mode = #tpu.pipeline_mode<synchronous>, transform_indices = @transform_1, window_bounds = array<i64: 300, 128>}, {pipeline_mode = #tpu.pipeline_mode<synchronous>, transform_indices = @transform_2, window_bounds = array<i64: 1, 128>}, {pipeline_mode = #tpu.pipeline_mode<synchronous>, transform_indices = @transform_3, window_bounds = array<i64: 128, 128>}, {pipeline_mode = #tpu.pipeline_mode<synchronous>, transform_indices = @transform_4, window_bounds = array<i64: 1, 128>}, {pipeline_mode = #tpu.pipeline_mode<synchronous>, transform_indices = @transform_5, window_bounds = array<i64: 128, 128>}, {pipeline_mode = #tpu.pipeline_mode<synchronous>, transform_indices = @transform_6, window_bounds = array<i64: 1, 128>}, {transform_indices = @transform_7, window_bounds = array<i64: 8, 128>}]} {
    %c0 = arith.constant 0 : index
    %c0_0 = arith.constant 0 : index
    %0 = vector.load %arg1[%c0, %c0_0] : memref<8x300xf32, #tpu.memory_space<vmem>>, vector<8x300xf32>
    %c0_1 = arith.constant 0 : index
    %c0_2 = arith.constant 0 : index
    %1 = vector.load %arg2[%c0_1, %c0_2] : memref<300x128xf32, #tpu.memory_space<vmem>>, vector<300x128xf32>
    %cst = arith.constant dense<0.000000e+00> : vector<8x128xf32>
    %2 = tpu.matmul %0, %1, %cst {dimension_numbers = #tpu.dot_dimension_numbers<[1], [0], [0], [1], [0, 0, 1, 1], [], []>} : vector<8x300xf32>, vector<300x128xf32>, vector<8x128xf32> -> vector<8x128xf32>
    %c0_3 = arith.constant 0 : index
    %c0_4 = arith.constant 0 : index
    %3 = vector.load %arg3[%c0_3, %c0_4] : memref<1x128xf32, #tpu.memory_space<vmem>>, vector<1x128xf32>
    %4 = vector.broadcast %3 : vector<1x128xf32> to vector<8x128xf32>
    %5 = arith.addf %2, %4 : vector<8x128xf32>
    %cst_5 = arith.constant 0.000000e+00 : f32
    %6 = vector.broadcast %cst_5 : f32 to vector<8x128xf32>
    %7 = arith.maximumf %5, %6 : vector<8x128xf32>
    %c0_6 = arith.constant 0 : index
    %c0_7 = arith.constant 0 : index
    %8 = vector.load %arg4[%c0_6, %c0_7] : memref<128x128xf32, #tpu.memory_space<vmem>>, vector<128x128xf32>
    %cst_8 = arith.constant dense<0.000000e+00> : vector<8x128xf32>
    %9 = tpu.matmul %7, %8, %cst_8 {dimension_numbers = #tpu.dot_dimension_numbers<[1], [0], [0], [1], [0, 0, 1, 1], [], []>} : vector<8x128xf32>, vector<128x128xf32>, vector<8x128xf32> -> vector<8x128xf32>
    %c0_9 = arith.constant 0 : index
    %c0_10 = arith.constant 0 : index
    %10 = vector.load %arg5[%c0_9, %c0_10] : memref<1x128xf32, #tpu.memory_space<vmem>>, vector<1x128xf32>
    %11 = vector.broadcast %10 : vector<1x128xf32> to vector<8x128xf32>
    %12 = arith.addf %9, %11 : vector<8x128xf32>
    %cst_11 = arith.constant 0.000000e+00 : f32
    %13 = vector.broadcast %cst_11 : f32 to vector<8x128xf32>
    %14 = arith.maximumf %12, %13 : vector<8x128xf32>
    %c0_12 = arith.constant 0 : index
    %c0_13 = arith.constant 0 : index
    %15 = vector.load %arg6[%c0_12, %c0_13] : memref<128x128xf32, #tpu.memory_space<vmem>>, vector<128x128xf32>
    %cst_14 = arith.constant dense<0.000000e+00> : vector<8x128xf32>
    %16 = tpu.matmul %14, %15, %cst_14 {dimension_numbers = #tpu.dot_dimension_numbers<[1], [0], [0], [1], [0, 0, 1, 1], [], []>} : vector<8x128xf32>, vector<128x128xf32>, vector<8x128xf32> -> vector<8x128xf32>
    %c0_15 = arith.constant 0 : index
    %c0_16 = arith.constant 0 : index
    %17 = vector.load %arg7[%c0_15, %c0_16] : memref<1x128xf32, #tpu.memory_space<vmem>>, vector<1x128xf32>
    %18 = vector.broadcast %17 : vector<1x128xf32> to vector<8x128xf32>
    %19 = arith.addf %16, %18 : vector<8x128xf32>
    %c0_17 = arith.constant 0 : index
    %c0_18 = arith.constant 0 : index
    %20 = vector.load %arg8[%c0_17, %c0_18] : memref<8x128xf32, #tpu.memory_space<vmem>>, vector<8x128xf32>
    tpu.vector_store %arg8[%c0_17, %c0_18], %19 {strides = array<i32>} : memref<8x128xf32, #tpu.memory_space<vmem>>, vector<8x128xf32>,
    return
  }
  func.func @transform_0(%arg0: i32) -> (i32, i32) {
    %c0_i32 = arith.constant 0 : i32
    %c0_i32_0 = arith.constant 0 : i32
    return %arg0, %c0_i32 : i32, i32
  }
  func.func @transform_1(%arg0: i32) -> (i32, i32) {
    %c0_i32 = arith.constant 0 : i32
    %c0_i32_0 = arith.constant 0 : i32
    %c0_i32_1 = arith.constant 0 : i32
    return %c0_i32, %c0_i32_0 : i32, i32
  }
  func.func @transform_2(%arg0: i32) -> (i32, i32) {
    %c0_i32 = arith.constant 0 : i32
    %c0_i32_0 = arith.constant 0 : i32
    %c0_i32_1 = arith.constant 0 : i32
    return %c0_i32, %c0_i32_0 : i32, i32
  }
  func.func @transform_3(%arg0: i32) -> (i32, i32) {
    %c0_i32 = arith.constant 0 : i32
    %c0_i32_0 = arith.constant 0 : i32
    %c0_i32_1 = arith.constant 0 : i32
    return %c0_i32, %c0_i32_0 : i32, i32
  }
  func.func @transform_4(%arg0: i32) -> (i32, i32) {
    %c0_i32 = arith.constant 0 : i32
    %c0_i32_0 = arith.constant 0 : i32
    %c0_i32_1 = arith.constant 0 : i32
    return %c0_i32, %c0_i32_0 : i32, i32
  }
  func.func @transform_5(%arg0: i32) -> (i32, i32) {
    %c0_i32 = arith.constant 0 : i32
    %c0_i32_0 = arith.constant 0 : i32
    %c0_i32_1 = arith.constant 0 : i32
    return %c0_i32, %c0_i32_0 : i32, i32
  }
  func.func @transform_6(%arg0: i32) -> (i32, i32) {
    %c0_i32 = arith.constant 0 : i32
    %c0_i32_0 = arith.constant 0 : i32
    %c0_i32_1 = arith.constant 0 : i32
    return %c0_i32, %c0_i32_0 : i32, i32
  }
  func.func @transform_7(%arg0: i32) -> (i32, i32) {
    %c0_i32 = arith.constant 0 : i32
    %c0_i32_0 = arith.constant 0 : i32
    return %arg0, %c0_i32 : i32, i32
  }
}

</mosaic_0001>

<llo_original>
// kernel: tpu_custom_call.1
$region0: #{tpu_custom_call.1}
  #allocation0 [shape = 'u32[]', space=smem, size = 0x4, offset = 0x4, fixed_abs, tag = 'smem constant byte address 0x4 - core index']
  #allocation1 [shape = 'u32[144,128]{1,0:T(1,128)}', space=vmem, size = 0x12000, scoped, tag = 'internal scratch']
  %s0 = inlined_call_operand.hbm [shape: f32[8,300], index: 0, kind: input, shape index: {}]
  %s1 = inlined_call_operand.hbm [shape: f32[300,128], index: 1, kind: input, shape index: {}]
  %s2 = inlined_call_operand.vmem [shape: f32[1,128], index: 2, kind: input, shape index: {}]
  %s3 = inlined_call_operand.hbm [shape: f32[128,128], index: 3, kind: input, shape index: {}]
  %s4 = inlined_call_operand.vmem [shape: f32[1,128], index: 4, kind: input, shape index: {}]
  %s5 = inlined_call_operand.hbm [shape: f32[128,128], index: 5, kind: input, shape index: {}]
  %s6 = inlined_call_operand.vmem [shape: f32[1,128], index: 6, kind: input, shape index: {}]
  %s7 = inlined_call_operand.hbm [shape: f32[8,128], index: 7, kind: output, shape index: {}]
  %s8 = sld [smem:[#allocation0]]
  $region54: #{tpu_custom_call.1} parent=0
    _
  %s10 = ssub.s32 1, %s8
  %s11 = scalar_select 0, %s10, %s8
  $region1: #{tpu_custom_call.1} parent=0
    #allocation2 [shape = 'u8[12288]{0}', space=vmem, size = 0x3000, scoped, tag = 'input window, operand 0, single buffered']
    #allocation3 [shape = 's32[1]{0}', space=sflag, size = 0x4, scoped, tag = 'scoped memory for tpu_custom_call.1']
    #allocation4 [shape = 's32[1]{0}', space=sflag, size = 0x4, scoped, tag = 'scoped memory for tpu_custom_call.1']
    #allocation5 [shape = 'u8[155648]{0}', space=vmem, size = 0x26000, scoped, tag = 'input window, operand 1, single buffered']
    #allocation6 [shape = 's32[1]{0}', space=sflag, size = 0x4, scoped, tag = 'scoped memory for tpu_custom_call.1']
    #allocation7 [shape = 'u8[65536]{0}', space=vmem, size = 0x10000, scoped, tag = 'input window, operand 3, single buffered']
    #allocation8 [shape = 'u8[65536]{0}', space=vmem, size = 0x10000, scoped, tag = 'input window, operand 5, single buffered']
    #allocation9 [shape = 's32[1]{0}', space=sflag, size = 0x4, scoped, tag = 'scoped memory for tpu_custom_call.1']
    #allocation10 [shape = 'u8[4096]{0}', space=vmem, size = 0x1000, scoped, tag = 'output window, operand 0, single buffered']
    %12 = vsyncpa [#allocation3], 0
    %13 = vsyncpa [#allocation6], 0
    %14 = vsyncpa [#allocation9], 0
    %15 = vsyncpa [#allocation4], 0
    // Predicated region
    $region2: #{tpu_custom_call.1} parent=1 // pred_check
      _
    $region3: #{tpu_custom_call.1} parent=1 // pred_check_branch
      %17 = sbr.rel (0) target = $region5
    $region4: #{tpu_custom_call.1} parent=1 // pred_region
      %s19 = ssub.s32 384, 384
      %20 = vsyncadd [#allocation3], %s19
      %s22 = sshll.u32 [#allocation2], 4
      %s23 = int_to_ptr.vmem [resolvable:$true] %s22
      %25 = dma.hbm_to_vmem [thread:$0]  %s0, 384, %s23, [#allocation3]
    $region5: #{tpu_custom_call.1} parent=1 // pred_fallthru
      _
    // Predicated region
    $region6: #{tpu_custom_call.1} parent=1 // pred_check
      _
    $region7: #{tpu_custom_call.1} parent=1 // pred_check_branch
      %27 = sbr.rel (0) target = $region9
    $region8: #{tpu_custom_call.1} parent=1 // pred_region
      %s29 = ssub.s32 4864, 4864
      %30 = vsyncadd [#allocation6], %s29
      %s31 = sshll.u32 [#allocation5], 4
      %s32 = int_to_ptr.vmem [resolvable:$true] %s31
      %37 = dma.hbm_to_vmem [thread:$0]  %s1, 4864, %s32, [#allocation6], 128, 128, 8
    $region9: #{tpu_custom_call.1} parent=1 // pred_fallthru
      _
    // Predicated region
    $region10: #{tpu_custom_call.1} parent=1 // pred_check
      _
    $region11: #{tpu_custom_call.1} parent=1 // pred_check_branch
      %39 = sbr.rel (0) target = $region13
    $region12: #{tpu_custom_call.1} parent=1 // pred_region
      _
    $region13: #{tpu_custom_call.1} parent=1 // pred_fallthru
      _
    // Predicated region
    $region14: #{tpu_custom_call.1} parent=1 // pred_check
      _
    $region15: #{tpu_custom_call.1} parent=1 // pred_check_branch
      %41 = sbr.rel (0) target = $region17
    $region16: #{tpu_custom_call.1} parent=1 // pred_region
      %s43 = ssub.s32 2048, 2048
      %44 = vsyncadd [#allocation6], %s43
      %s45 = sshll.u32 [#allocation7], 4
      %s46 = int_to_ptr.vmem [resolvable:$true] %s45
      %51 = dma.hbm_to_vmem [thread:$0]  %s3, 2048, %s46, [#allocation6], 128, 128, 8
    $region17: #{tpu_custom_call.1} parent=1 // pred_fallthru
      _
    // Predicated region
    $region18: #{tpu_custom_call.1} parent=1 // pred_check
      _
    $region19: #{tpu_custom_call.1} parent=1 // pred_check_branch
      %53 = sbr.rel (0) target = $region21
    $region20: #{tpu_custom_call.1} parent=1 // pred_region
      _
    $region21: #{tpu_custom_call.1} parent=1 // pred_fallthru
      _
    // Predicated region
    $region22: #{tpu_custom_call.1} parent=1 // pred_check
      _
    $region23: #{tpu_custom_call.1} parent=1 // pred_check_branch
      %55 = sbr.rel (0) target = $region25
    $region24: #{tpu_custom_call.1} parent=1 // pred_region
      %s57 = ssub.s32 2048, 2048
      %58 = vsyncadd [#allocation9], %s57
      %s59 = sshll.u32 [#allocation8], 4
      %s60 = int_to_ptr.vmem [resolvable:$true] %s59
      %65 = dma.hbm_to_vmem [thread:$0]  %s5, 2048, %s60, [#allocation9], 128, 128, 8
    $region25: #{tpu_custom_call.1} parent=1 // pred_fallthru
      _
    // Predicated region
    $region26: #{tpu_custom_call.1} parent=1 // pred_check
      _
    $region27: #{tpu_custom_call.1} parent=1 // pred_check_branch
      %67 = sbr.rel (0) target = $region29
    $region28: #{tpu_custom_call.1} parent=1 // pred_region
      _
    $region29: #{tpu_custom_call.1} parent=1 // pred_fallthru
      _
    // Predicated region
    $region30: #{tpu_custom_call.1} parent=1 // pred_check
      _
    $region31: #{tpu_custom_call.1} parent=1 // pred_check_branch
      %69 = sbr.rel (0) target = $region33
    $region32: #{tpu_custom_call.1} parent=1 // pred_region
      %70 = dma.done [#allocation3], 384
    $region33: #{tpu_custom_call.1} parent=1 // pred_fallthru
      _
    // Predicated region
    $region34: #{tpu_custom_call.1} parent=1 // pred_check
      _
    $region35: #{tpu_custom_call.1} parent=1 // pred_check_branch
      %72 = sbr.rel (0) target = $region37
    $region36: #{tpu_custom_call.1} parent=1 // pred_region
      %73 = dma.done [#allocation6], 4864
    $region37: #{tpu_custom_call.1} parent=1 // pred_fallthru
      _
    // Predicated region
    $region38: #{tpu_custom_call.1} parent=1 // pred_check
      _
    $region39: #{tpu_custom_call.1} parent=1 // pred_check_branch
      %75 = sbr.rel (0) target = $region41
    $region40: #{tpu_custom_call.1} parent=1 // pred_region
      %76 = dma.done [#allocation6], 2048
    $region41: #{tpu_custom_call.1} parent=1 // pred_fallthru
      _
    // Predicated region
    $region42: #{tpu_custom_call.1} parent=1 // pred_check
      _
    $region43: #{tpu_custom_call.1} parent=1 // pred_check_branch
      %78 = sbr.rel (0) target = $region45
    $region44: #{tpu_custom_call.1} parent=1 // pred_region
      %79 = dma.done [#allocation9], 2048
    $region45: #{tpu_custom_call.1} parent=1 // pred_fallthru
      _
    %v80 = vld [vmem:[#allocation2] sm:$0xff]
    %v81 = vld [vmem:[#allocation2 + $0x8] sm:$0xff]
    %v82 = vld [vmem:[#allocation2 + $0x10] sm:$0xff]
    %v83 = vld [vmem:[#allocation5] sm:$0xff]
    %v84 = vld [vmem:[#allocation5 + $0x8] sm:$0xff]
    %v85 = vld [vmem:[#allocation5 + $0x10] sm:$0xff]
    %v86 = vld [vmem:[#allocation5 + $0x18] sm:$0xff]
    %v87 = vld [vmem:[#allocation5 + $0x20] sm:$0xff]
    %v88 = vld [vmem:[#allocation5 + $0x28] sm:$0xff]
    %v89 = vld [vmem:[#allocation5 + $0x30] sm:$0xff]
    %v90 = vld [vmem:[#allocation5 + $0x38] sm:$0xff]
    %v91 = vld [vmem:[#allocation5 + $0x40] sm:$0xff]
    %v92 = vld [vmem:[#allocation5 + $0x48] sm:$0xff]
    %v93 = vld [vmem:[#allocation5 + $0x50] sm:$0xff]
    %v94 = vld [vmem:[#allocation5 + $0x58] sm:$0xff]
    %v95 = vld [vmem:[#allocation5 + $0x60] sm:$0xff]
    %v96 = vld [vmem:[#allocation5 + $0x68] sm:$0xff]
    %v97 = vld [vmem:[#allocation5 + $0x70] sm:$0xff]
    %v98 = vld [vmem:[#allocation5 + $0x78] sm:$0xff]
    %v99 = vld [vmem:[#allocation5 + $0x80] sm:$0xff]
    %v100 = vld [vmem:[#allocation5 + $0x88] sm:$0xff]
    %v101 = vld [vmem:[#allocation5 + $0x90] sm:$0xff]
    %v102 = vld [vmem:[#allocation5 + $0x98] sm:$0xff]
    %v103 = vld [vmem:[#allocation5 + $0xa0] sm:$0xff]
    %v104 = vld [vmem:[#allocation5 + $0xa8] sm:$0xff]
    %v105 = vld [vmem:[#allocation5 + $0xb0] sm:$0xff]
    %v106 = vld [vmem:[#allocation5 + $0xb8] sm:$0xff]
    %v107 = vld [vmem:[#allocation5 + $0xc0] sm:$0xff]
    %v108 = vld [vmem:[#allocation5 + $0xc8] sm:$0xff]
    %v109 = vld [vmem:[#allocation5 + $0xd0] sm:$0xff]
    %v110 = vld [vmem:[#allocation5 + $0xd8] sm:$0xff]
    %v111 = vld [vmem:[#allocation5 + $0xe0] sm:$0xff]
    %v112 = vld [vmem:[#allocation5 + $0xe8] sm:$0xff]
    %v113 = vld [vmem:[#allocation5 + $0xf0] sm:$0xff]
    %v114 = vld [vmem:[#allocation5 + $0xf8] sm:$0xff]
    %v115 = vld [vmem:[#allocation5 + $0x100] sm:$0xff]
    %v116 = vld [vmem:[#allocation5 + $0x108] sm:$0xff]
    %v117 = vld [vmem:[#allocation5 + $0x110] sm:$0xff]
    %v118 = vld [vmem:[#allocation5 + $0x118] sm:$0xff]
    %v119 = vld [vmem:[#allocation5 + $0x120] sm:$0xff]
    %v120 = vld [vmem:[#allocation5 + $0x128] sm:$0xf]
    %v121 = vld [vmem:[%s2] sm:$0x1]
    %v123 = vlaneseq
    %v124 = vshrl.u32 %v123, 7
    %v125 = vsub.s32 0, %v124
    %v126 = vrot.slane %v121, %v125
    %vm128 = vcmask 359424
    %v130 = vsel %vm128, %v82, 0
    %vm132 = vcmask 1043456
    %v134 = vsel %vm132, %v120, 0
    %136 = vmatprep.subr.mxu0 0.0
    %137 = vmatpush1.msra.mxu0 %v83
    %138 = vmatprep.subr.mxu0 0.0
    %139 = vmatpush1.msra.mxu0 %v84
    %140 = vmatprep.subr.mxu0 0.0
    %141 = vmatpush1.msra.mxu0 %v85
    %142 = vmatprep.subr.mxu0 0.0
    %143 = vmatpush1.msra.mxu0 %v86
    %144 = vmatprep.subr.mxu0 0.0
    %145 = vmatpush1.msra.mxu0 %v87
    %146 = vmatprep.subr.mxu0 0.0
    %147 = vmatpush1.msra.mxu0 %v88
    %148 = vmatprep.subr.mxu0 0.0
    %149 = vmatpush1.msra.mxu0 %v89
    %150 = vmatprep.subr.mxu0 0.0
    %151 = vmatpush1.msra.mxu0 %v90
    %152 = vmatprep.subr.mxu0 0.0
    %153 = vmatpush1.msra.mxu0 %v91
    %154 = vmatprep.subr.mxu0 0.0
    %155 = vmatpush1.msra.mxu0 %v92
    %156 = vmatprep.subr.mxu0 0.0
    %157 = vmatpush1.msra.mxu0 %v93
    %158 = vmatprep.subr.mxu0 0.0
    %159 = vmatpush1.msra.mxu0 %v94
    %160 = vmatprep.subr.mxu0 0.0
    %161 = vmatpush1.msra.mxu0 %v95
    %162 = vmatprep.subr.mxu0 0.0
    %163 = vmatpush1.msra.mxu0 %v96
    %164 = vmatprep.subr.mxu0 0.0
    %165 = vmatpush1.msra.mxu0 %v97
    %166 = vmatprep.subr.mxu0 0.0
    %167 = vmatpush1.msra.mxu0 %v98
    %168 = vmatprep.subr.mxu0 0.0
    %169 = vmatpush1.msra.mxu0 %v99
    %170 = vmatprep.subr.mxu0 0.0
    %171 = vmatpush1.msra.mxu0 %v100
    %172 = vmatprep.subr.mxu0 0.0
    %173 = vmatpush1.msra.mxu0 %v101
    %174 = vmatprep.subr.mxu0 0.0
    %175 = vmatpush1.msra.mxu0 %v102
    %176 = vmatprep.subr.mxu0 0.0
    %177 = vmatpush1.msra.mxu0 %v103
    %178 = vmatprep.subr.mxu0 0.0
    %179 = vmatpush1.msra.mxu0 %v104
    %180 = vmatprep.subr.mxu0 0.0
    %181 = vmatpush1.msra.mxu0 %v105
    %182 = vmatprep.subr.mxu0 0.0
    %183 = vmatpush1.msra.mxu0 %v106
    %184 = vmatprep.subr.mxu0 0.0
    %185 = vmatpush1.msra.mxu0 %v107
    %186 = vmatprep.subr.mxu0 0.0
    %187 = vmatpush1.msra.mxu0 %v108
    %188 = vmatprep.subr.mxu0 0.0
    %189 = vmatpush1.msra.mxu0 %v109
    %190 = vmatprep.subr.mxu0 0.0
    %191 = vmatpush1.msra.mxu0 %v110
    %192 = vmatprep.subr.mxu0 0.0
    %193 = vmatpush1.msra.mxu0 %v111
    %194 = vmatprep.subr.mxu0 0.0
    %195 = vmatpush1.msra.mxu0 %v112
    %196 = vmatprep.subr.mxu0 0.0
    %197 = vmatpush1.msra.mxu0 %v113
    %198 = vmatprep.subr.mxu0 0.0
    %199 = vmatpush1.msra.mxu0 %v114
    %200 = vmatprep.mubr.f32.mxu0 %v81
    %201 = vmatmul.mubr.f32.gmra.mrb[0].mxu0 %v80
    %v202 = vpop.f32.mrb[0].mxu0
    %v203 = vadd.f32 %v126, %v202
    %v204 = vpop.f32.mrb[0].mxu0
    %205 = vdwg.mxu0
    %206 = vmatprep.subr.mxu0 0.0
    %207 = vmatpush1.msra.mxu0 %v115
    %208 = vmatprep.subr.mxu0 0.0
    %209 = vmatpush1.msra.mxu0 %v116
    %210 = vmatprep.subr.mxu0 0.0
    %211 = vmatpush1.msra.mxu0 %v117
    %212 = vmatprep.subr.mxu0 0.0
    %213 = vmatpush1.msra.mxu0 %v118
    %214 = vmatprep.subr.mxu0 0.0
    %215 = vmatpush1.msra.mxu0 %v119
    %216 = vmatprep.subr.mxu0 0.0
    %217 = vmatpush1.msra.mxu0 %v134
    %218 = vmatprep.subr.mxu0 0.0
    %219 = vmatpush1.msra.mxu0 0.0
    %220 = vmatprep.subr.mxu0 0.0
    %221 = vmatpush1.msra.mxu0 0.0
    %222 = vmatprep.subr.mxu0 0.0
    %223 = vmatpush1.msra.mxu0 0.0
    %224 = vmatprep.subr.mxu0 0.0
    %225 = vmatpush1.msra.mxu0 0.0
    %226 = vmatprep.subr.mxu0 0.0
    %227 = vmatpush1.msra.mxu0 0.0
    %228 = vmatprep.subr.mxu0 0.0
    %229 = vmatpush1.msra.mxu0 0.0
    %230 = vmatprep.subr.mxu0 0.0
    %231 = vmatpush1.msra.mxu0 0.0
    %232 = vmatprep.subr.mxu0 0.0
    %233 = vmatpush1.msra.mxu0 0.0
    %234 = vmatprep.subr.mxu0 0.0
    %235 = vmatpush1.msra.mxu0 0.0
    %236 = vmatprep.subr.mxu0 0.0
    %237 = vmatpush1.msra.mxu0 0.0
    %238 = vmatprep.subr.mxu0 0.0
    %239 = vmatpush1.msra.mxu0 0.0
    %240 = vmatprep.subr.mxu0 0.0
    %241 = vmatpush1.msra.mxu0 0.0
    %242 = vmatprep.subr.mxu0 0.0
    %243 = vmatpush1.msra.mxu0 0.0
    %244 = vmatprep.subr.mxu0 0.0
    %245 = vmatpush1.msra.mxu0 0.0
    %246 = vmatprep.subr.mxu0 0.0
    %247 = vmatpush1.msra.mxu0 0.0
    %248 = vmatprep.subr.mxu0 0.0
    %249 = vmatpush1.msra.mxu0 0.0
    %250 = vmatprep.subr.mxu0 0.0
    %251 = vmatpush1.msra.mxu0 0.0
    %252 = vmatprep.subr.mxu0 0.0
    %253 = vmatpush1.msra.mxu0 0.0
    %254 = vmatprep.subr.mxu0 0.0
    %255 = vmatpush1.msra.mxu0 0.0
    %256 = vmatprep.subr.mxu0 0.0
    %257 = vmatpush1.msra.mxu0 0.0
    %258 = vmatprep.subr.mxu0 0.0
    %259 = vmatpush1.msra.mxu0 0.0
    %260 = vmatprep.subr.mxu0 0.0
    %261 = vmatpush1.msra.mxu0 0.0
    %262 = vmatprep.subr.mxu0 0.0
    %263 = vmatpush1.msra.mxu0 0.0
    %264 = vmatprep.subr.mxu0 0.0
    %265 = vmatpush1.msra.mxu0 0.0
    %266 = vmatprep.subr.mxu0 0.0
    %267 = vmatpush1.msra.mxu0 0.0
    %268 = vmatprep.subr.mxu0 0.0
    %269 = vmatpush1.msra.mxu0 0.0
    %270 = vmatprep.mubr.f32.mxu0 0.0
    %271 = vmatmul.mubr.f32.gmra.mrb[0].mxu0 %v130
    %v272 = vpop.f32.mrb[0].mxu0
    %v273 = vadd.f32 %v203, %v272
    %v274 = vpop.f32.mrb[0].mxu0
    %275 = vdwg.mxu0
    %v276 = vmax.f32 %v273, 0.0
    %v277 = vld [vmem:[#allocation7] sm:$0xff]
    %v278 = vld [vmem:[#allocation7 + $0x8] sm:$0xff]
    %v279 = vld [vmem:[#allocation7 + $0x10] sm:$0xff]
    %v280 = vld [vmem:[#allocation7 + $0x18] sm:$0xff]
    %v281 = vld [vmem:[#allocation7 + $0x20] sm:$0xff]
    %v282 = vld [vmem:[#allocation7 + $0x28] sm:$0xff]
    %v283 = vld [vmem:[#allocation7 + $0x30] sm:$0xff]
    %v284 = vld [vmem:[#allocation7 + $0x38] sm:$0xff]
    %v285 = vld [vmem:[#allocation7 + $0x40] sm:$0xff]
    %v286 = vld [vmem:[#allocation7 + $0x48] sm:$0xff]
    %v287 = vld [vmem:[#allocation7 + $0x50] sm:$0xff]
    %v288 = vld [vmem:[#allocation7 + $0x58] sm:$0xff]
    %v289 = vld [vmem:[#allocation7 + $0x60] sm:$0xff]
    %v290 = vld [vmem:[#allocation7 + $0x68] sm:$0xff]
    %v291 = vld [vmem:[#allocation7 + $0x70] sm:$0xff]
    %v292 = vld [vmem:[#allocation7 + $0x78] sm:$0xff]
    %v293 = vld [vmem:[%s4] sm:$0x1]
    %v295 = vlaneseq
    %v296 = vshrl.u32 %v295, 7
    %v297 = vsub.s32 0, %v296
    %v298 = vrot.slane %v293, %v297
    %300 = vmatprep.subr.mxu0 0.0
    %301 = vmatpush1.msra.mxu0 %v277
    %302 = vmatprep.subr.mxu0 0.0
    %303 = vmatpush1.msra.mxu0 %v278
    %304 = vmatprep.subr.mxu0 0.0
    %305 = vmatpush1.msra.mxu0 %v279
    %306 = vmatprep.subr.mxu0 0.0
    %307 = vmatpush1.msra.mxu0 %v280
    %308 = vmatprep.subr.mxu0 0.0
    %309 = vmatpush1.msra.mxu0 %v281
    %310 = vmatprep.subr.mxu0 0.0
    %311 = vmatpush1.msra.mxu0 %v282
    %312 = vmatprep.subr.mxu0 0.0
    %313 = vmatpush1.msra.mxu0 %v283
    %314 = vmatprep.subr.mxu0 0.0
    %315 = vmatpush1.msra.mxu0 %v284
    %316 = vmatprep.subr.mxu0 0.0
    %317 = vmatpush1.msra.mxu0 %v285
    %318 = vmatprep.subr.mxu0 0.0
    %319 = vmatpush1.msra.mxu0 %v286
    %320 = vmatprep.subr.mxu0 0.0
    %321 = vmatpush1.msra.mxu0 %v287
    %322 = vmatprep.subr.mxu0 0.0
    %323 = vmatpush1.msra.mxu0 %v288
    %324 = vmatprep.subr.mxu0 0.0
    %325 = vmatpush1.msra.mxu0 %v289
    %326 = vmatprep.subr.mxu0 0.0
    %327 = vmatpush1.msra.mxu0 %v290
    %328 = vmatprep.subr.mxu0 0.0
    %329 = vmatpush1.msra.mxu0 %v291
    %330 = vmatprep.subr.mxu0 0.0
    %331 = vmatpush1.msra.mxu0 %v292
    %332 = vmatprep.subr.mxu0 0.0
    %333 = vmatpush1.msra.mxu0 0.0
    %334 = vmatprep.subr.mxu0 0.0
    %335 = vmatpush1.msra.mxu0 0.0
    %336 = vmatprep.subr.mxu0 0.0
    %337 = vmatpush1.msra.mxu0 0.0
    %338 = vmatprep.subr.mxu0 0.0
    %339 = vmatpush1.msra.mxu0 0.0
    %340 = vmatprep.subr.mxu0 0.0
    %341 = vmatpush1.msra.mxu0 0.0
    %342 = vmatprep.subr.mxu0 0.0
    %343 = vmatpush1.msra.mxu0 0.0
    %344 = vmatprep.subr.mxu0 0.0
    %345 = vmatpush1.msra.mxu0 0.0
    %346 = vmatprep.subr.mxu0 0.0
    %347 = vmatpush1.msra.mxu0 0.0
    %348 = vmatprep.subr.mxu0 0.0
    %349 = vmatpush1.msra.mxu0 0.0
    %350 = vmatprep.subr.mxu0 0.0
    %351 = vmatpush1.msra.mxu0 0.0
    %352 = vmatprep.subr.mxu0 0.0
    %353 = vmatpush1.msra.mxu0 0.0
    %354 = vmatprep.subr.mxu0 0.0
    %355 = vmatpush1.msra.mxu0 0.0
    %356 = vmatprep.subr.mxu0 0.0
    %357 = vmatpush1.msra.mxu0 0.0
    %358 = vmatprep.subr.mxu0 0.0
    %359 = vmatpush1.msra.mxu0 0.0
    %360 = vmatprep.subr.mxu0 0.0
    %361 = vmatpush1.msra.mxu0 0.0
    %362 = vmatprep.subr.mxu0 0.0
    %363 = vmatpush1.msra.mxu0 0.0
    %364 = vmatprep.mubr.f32.mxu0 0.0
    %365 = vmatmul.mubr.f32.gmra.mrb[0].mxu0 %v276
    %v366 = vpop.f32.mrb[0].mxu0
    %v367 = vadd.f32 %v298, %v366
    %v368 = vpop.f32.mrb[0].mxu0
    %369 = vdwg.mxu0
    %v370 = vmax.f32 %v367, 0.0
    %v371 = vld [vmem:[#allocation8] sm:$0xff]
    %v372 = vld [vmem:[#allocation8 + $0x8] sm:$0xff]
    %v373 = vld [vmem:[#allocation8 + $0x10] sm:$0xff]
    %v374 = vld [vmem:[#allocation8 + $0x18] sm:$0xff]
    %v375 = vld [vmem:[#allocation8 + $0x20] sm:$0xff]
    %v376 = vld [vmem:[#allocation8 + $0x28] sm:$0xff]
    %v377 = vld [vmem:[#allocation8 + $0x30] sm:$0xff]
    %v378 = vld [vmem:[#allocation8 + $0x38] sm:$0xff]
    %v379 = vld [vmem:[#allocation8 + $0x40] sm:$0xff]
    %v380 = vld [vmem:[#allocation8 + $0x48] sm:$0xff]
    %v381 = vld [vmem:[#allocation8 + $0x50] sm:$0xff]
    %v382 = vld [vmem:[#allocation8 + $0x58] sm:$0xff]
    %v383 = vld [vmem:[#allocation8 + $0x60] sm:$0xff]
    %v384 = vld [vmem:[#allocation8 + $0x68] sm:$0xff]
    %v385 = vld [vmem:[#allocation8 + $0x70] sm:$0xff]
    %v386 = vld [vmem:[#allocation8 + $0x78] sm:$0xff]
    %v387 = vld [vmem:[%s6] sm:$0x1]
    %v389 = vlaneseq
    %v390 = vshrl.u32 %v389, 7
    %v391 = vsub.s32 0, %v390
    %v392 = vrot.slane %v387, %v391
    %394 = vmatprep.subr.mxu0 0.0
    %395 = vmatpush1.msra.mxu0 %v371
    %396 = vmatprep.subr.mxu0 0.0
    %397 = vmatpush1.msra.mxu0 %v372
    %398 = vmatprep.subr.mxu0 0.0
    %399 = vmatpush1.msra.mxu0 %v373
    %400 = vmatprep.subr.mxu0 0.0
    %401 = vmatpush1.msra.mxu0 %v374
    %402 = vmatprep.subr.mxu0 0.0
    %403 = vmatpush1.msra.mxu0 %v375
    %404 = vmatprep.subr.mxu0 0.0
    %405 = vmatpush1.msra.mxu0 %v376
    %406 = vmatprep.subr.mxu0 0.0
    %407 = vmatpush1.msra.mxu0 %v377
    %408 = vmatprep.subr.mxu0 0.0
    %409 = vmatpush1.msra.mxu0 %v378
    %410 = vmatprep.subr.mxu0 0.0
    %411 = vmatpush1.msra.mxu0 %v379
    %412 = vmatprep.subr.mxu0 0.0
    %413 = vmatpush1.msra.mxu0 %v380
    %414 = vmatprep.subr.mxu0 0.0
    %415 = vmatpush1.msra.mxu0 %v381
    %416 = vmatprep.subr.mxu0 0.0
    %417 = vmatpush1.msra.mxu0 %v382
    %418 = vmatprep.subr.mxu0 0.0
    %419 = vmatpush1.msra.mxu0 %v383
    %420 = vmatprep.subr.mxu0 0.0
    %421 = vmatpush1.msra.mxu0 %v384
    %422 = vmatprep.subr.mxu0 0.0
    %423 = vmatpush1.msra.mxu0 %v385
    %424 = vmatprep.subr.mxu0 0.0
    %425 = vmatpush1.msra.mxu0 %v386
    %426 = vmatprep.subr.mxu0 0.0
    %427 = vmatpush1.msra.mxu0 0.0
    %428 = vmatprep.subr.mxu0 0.0
    %429 = vmatpush1.msra.mxu0 0.0
    %430 = vmatprep.subr.mxu0 0.0
    %431 = vmatpush1.msra.mxu0 0.0
    %432 = vmatprep.subr.mxu0 0.0
    %433 = vmatpush1.msra.mxu0 0.0
    %434 = vmatprep.subr.mxu0 0.0
    %435 = vmatpush1.msra.mxu0 0.0
    %436 = vmatprep.subr.mxu0 0.0
    %437 = vmatpush1.msra.mxu0 0.0
    %438 = vmatprep.subr.mxu0 0.0
    %439 = vmatpush1.msra.mxu0 0.0
    %440 = vmatprep.subr.mxu0 0.0
    %441 = vmatpush1.msra.mxu0 0.0
    %442 = vmatprep.subr.mxu0 0.0
    %443 = vmatpush1.msra.mxu0 0.0
    %444 = vmatprep.subr.mxu0 0.0
    %445 = vmatpush1.msra.mxu0 0.0
    %446 = vmatprep.subr.mxu0 0.0
    %447 = vmatpush1.msra.mxu0 0.0
    %448 = vmatprep.subr.mxu0 0.0
    %449 = vmatpush1.msra.mxu0 0.0
    %450 = vmatprep.subr.mxu0 0.0
    %451 = vmatpush1.msra.mxu0 0.0
    %452 = vmatprep.subr.mxu0 0.0
    %453 = vmatpush1.msra.mxu0 0.0
    %454 = vmatprep.subr.mxu0 0.0
    %455 = vmatpush1.msra.mxu0 0.0
    %456 = vmatprep.subr.mxu0 0.0
    %457 = vmatpush1.msra.mxu0 0.0
    %458 = vmatprep.mubr.f32.mxu0 0.0
    %459 = vmatmul.mubr.f32.gmra.mrb[0].mxu0 %v370
    %v460 = vpop.f32.mrb[0].mxu0
    %v461 = vadd.f32 %v392, %v460
    %v462 = vpop.f32.mrb[0].mxu0
    %463 = vdwg.mxu0
    %464 = vst [vmem:[#allocation10] sm:$0xff] %v461
    // Predicated region
    $region46: #{tpu_custom_call.1} parent=1 // pred_check
      _
    $region47: #{tpu_custom_call.1} parent=1 // pred_check_branch
      %466 = sbr.rel (0) target = $region49
    $region48: #{tpu_custom_call.1} parent=1 // pred_region
      %s468 = ssub.s32 128, 128
      %469 = vsyncadd [#allocation4], %s468
      %s471 = sshll.u32 [#allocation10], 4
      %s472 = int_to_ptr.vmem [resolvable:$true] %s471
      %474 = dma.vmem_to_hbm [thread:$0]  %s472, 128, %s7, [#allocation4]
    $region49: #{tpu_custom_call.1} parent=1 // pred_fallthru
      _
    // Predicated region
    $region50: #{tpu_custom_call.1} parent=1 // pred_check
      _
    $region51: #{tpu_custom_call.1} parent=1 // pred_check_branch
      %476 = sbr.rel (0) target = $region53
    $region52: #{tpu_custom_call.1} parent=1 // pred_region
      %477 = dma.done [#allocation4], 128
    $region53: #{tpu_custom_call.1} parent=1 // pred_fallthru
      _
    %478 = vsyncpa [#allocation3], 1
    %479 = vsyncpa [#allocation6], 1
    %480 = vsyncpa [#allocation9], 1
    %481 = vsyncpa [#allocation4], 1

</llo_original>
